<compile_context>
chip_gen: v6e
topology: v6e:2x2x1
jax: 0.10.0
libtpu: 0.0.40
codegen_flags: <defaults>
</compile_context>

<pallas_src>
import functools
import math

import jax
import jax.numpy as jnp
from jax.experimental import pallas as pl
from jax.experimental.pallas import tpu as pltpu


def _make_dense_kernel(x_ref, w_ref, b_ref, o_ref, *,
                       nb, cin, kh, kw, wp, hwp, base, bf16_matmul):
    # x_ref: (NB, Cin_pad, L)          flattened zero-padded images (row stride wp)
    # w_ref: (Cout, KH*KW*Cin_pad)     fused conv weights, tap-major / cin-minor
    # b_ref: (Cout, 1)                 bias, broadcast over lanes
    # o_ref: (NB, Cin+Cout, H*Wp)      [x ; relu(conv(x))] in strided lane layout
    #
    # Build the im2col patch matrix: for tap (dy, dx) the slab is a contiguous lane
    # slice at static offset dy*wp+dx ("strided rows" trick).  With Cin_pad a
    # multiple of 8 and hwp a multiple of 128 both concats are pure tile stacking.
    tap_slabs = []
    for dy in range(kh):
        for dx in range(kw):
            off = dy * wp + dx                                  # static offset
            if nb == 1:
                slab = x_ref[0, :, off:off + hwp]               # (Cin_pad, HWp)
            else:
                slab = jnp.concatenate(
                    [x_ref[b, :, off:off + hwp] for b in range(nb)],
                    axis=1)                                     # (Cin_pad, NB*HWp)
            tap_slabs.append(slab)
    patches = jnp.concatenate(tap_slabs, axis=0)                # (KH*KW*Cin_pad, NB*HWp)

    w = w_ref[...]
    if bf16_matmul:                                             # v6e/v7x MXU peak is bf16
        w = w.astype(jnp.bfloat16)
        patches = patches.astype(jnp.bfloat16)

    acc = jnp.dot(w, patches, preferred_element_type=jnp.float32)  # (Cout, NB*HWp)
    acc = jnp.maximum(acc + b_ref[...], 0.0).astype(o_ref.dtype)   # bias + ReLU in f32

    for b in range(nb):
        # x passthrough (torch.cat((x, out), 1)): interior of the padded image,
        # re-expressed in the strided (H, Wp) lane layout (cols j >= W are garbage
        # and get sliced off by the wrapper).
        o_ref[b, :cin, :] = x_ref[b, :cin, base:base + hwp].astype(o_ref.dtype)
        # conv result for image b: aligned lane slice (hwp is a multiple of 128).
        o_ref[b, cin:, :] = acc[:, b * hwp:(b + 1) * hwp]


def make_dense_forward(x_nchw, weight_oihw, bias, *,
                       images_per_block=None, bf16_matmul=False):
    """Forward of MakeDense. x: (N, Cin, H, W) NCHW; returns (N, Cin+Cout, H, W)."""
    N, Cin, H, W = x_nchw.shape
    Cout, _, KH, KW = weight_oihw.shape
    assert KH % 2 == 1 and KW % 2 == 1, \
        "only odd kernel sizes reproduce PyTorch padding=(k-1)//2 exactly"

    if images_per_block is None:
        # Keep >= 2 grid steps when possible (v7x megacore) while halving the
        # per-step overhead for larger batches.  Pass images_per_block=N on
        # v5e/v6e to collapse to a single fat step.
        images_per_block = N // 2 if (N % 2 == 0 and N >= 2) else 1
    nb = images_per_block
    assert N % nb == 0, "batch must be divisible by images_per_block"

    ph, pw = (KH - 1) // 2, (KW - 1) // 2
    cin_pad = -(-Cin // 8) * 8                         # f32 sublane tile

    # Padded row width; round up so H*Wp is a multiple of 128 (unmasked stores,
    # 128-aligned per-image lane slabs) when it only costs a few columns.
    wp = W + 2 * pw
    step = 128 // math.gcd(H, 128)
    wp_aligned = -(-wp // step) * step
    if wp_aligned - wp <= 16:
        wp = wp_aligned
    hwp = H * wp

    # Extra zero rows at the bottom so every tap's flat slice stays in-bounds.
    extra_rows = -(-(KW - 1) // wp) if KW > 1 else 0
    L = (H + 2 * ph + extra_rows) * wp
    base = ph * wp + pw                                # x-interior offset in the flat image
    assert (KH - 1) * wp + (KW - 1) + hwp <= L and base + hwp <= L

    x_pad = jnp.pad(x_nchw, ((0, 0), (0, cin_pad - Cin),
                             (ph, ph + extra_rows), (pw, wp - W - pw)))
    x_flat = x_pad.reshape(N, cin_pad, L)

    # (Cout, KH*KW*Cin_pad): row index of patches = (dy*KW + dx)*Cin_pad + cin.
    w_pad = jnp.pad(weight_oihw, ((0, 0), (0, cin_pad - Cin), (0, 0), (0, 0)))
    w_mat = jnp.transpose(w_pad, (0, 2, 3, 1)).reshape(Cout, KH * KW * cin_pad)
    b2 = bias.reshape(Cout, 1)

    Ctot = Cin + Cout
    itemsize = jnp.dtype(x_nchw.dtype).itemsize
    cost = pl.CostEstimate(
        flops=2 * N * hwp * KH * KW * cin_pad * Cout,
        transcendentals=0,
        bytes_accessed=(N * cin_pad * L + Cout * KH * KW * cin_pad + Cout
                        + N * Ctot * hwp) * itemsize,
    )

    kernel = functools.partial(
        _make_dense_kernel, nb=nb, cin=Cin, kh=KH, kw=KW, wp=wp, hwp=hwp,
        base=base, bf16_matmul=bf16_matmul)

    out_strided = pl.pallas_call(
        kernel,
        out_shape=jax.ShapeDtypeStruct((N, Ctot, hwp), x_nchw.dtype),
        grid_spec=pl.GridSpec(
            grid=(N // nb,),
            in_specs=[
                pl.BlockSpec((nb, cin_pad, L), lambda n: (n, 0, 0)),
                pl.BlockSpec((Cout, KH * KW * cin_pad), lambda n: (0, 0)),
                pl.BlockSpec((Cout, 1), lambda n: (0, 0)),
            ],
            out_specs=pl.BlockSpec((nb, Ctot, hwp), lambda n: (n, 0, 0)),
        ),
        compiler_params=pltpu.CompilerParams(
            dimension_semantics=("parallel",)),
        cost_estimate=cost,
    )(x_flat, w_mat, b2)

    # Single epilogue op: drop the right-padding columns of the strided layout.
    # (The channel concat is already done inside the kernel.)
    return out_strided.reshape(N, Ctot, H, wp)[..., :W]


if __name__ == "__main__":
    # MakeDense(in_channels=4, growth_rate=8, kernel_size=3), N=2, 16x16 images.
    N, Cin, H, W = 2, 4, 16, 16
    Cout, K = 8, 3

    key = jax.random.PRNGKey(0)
    kx, kw_, kb = jax.random.split(key, 3)
    x = jax.random.normal(kx, (N, Cin, H, W), dtype=jnp.float32)
    weight = jax.random.normal(kw_, (Cout, Cin, K, K), dtype=jnp.float32) * 0.1
    bias = jax.random.normal(kb, (Cout,), dtype=jnp.float32) * 0.1

    # Pure-JAX reference (matches PyTorch: relu(conv(x)) then cat along channels).
    ref_conv = jax.lax.conv_general_dilated(
        x, weight, window_strides=(1, 1), padding="SAME",
        dimension_numbers=("NCHW", "OIHW", "NCHW"))
    ref = jnp.concatenate(
        [x, jnp.maximum(ref_conv + bias[None, :, None, None], 0.0)], axis=1)

    # Default config: one image per grid step, grid=(2,) "parallel".
    out = jax.block_until_ready(make_dense_forward(x, weight, bias))
    assert out.shape == (N, Cin + Cout, H, W), out.shape
    assert jnp.allclose(out, ref, rtol=1e-4, atol=1e-4), \
        float(jnp.max(jnp.abs(out - ref)))

    # Lane-batched config: both images' patches stacked along lanes, single step.
    out2 = jax.block_until_ready(
        make_dense_forward(x, weight, bias, images_per_block=2))
    assert jnp.allclose(out2, ref, rtol=1e-4, atol=1e-4), \
        float(jnp.max(jnp.abs(out2 - ref)))

    print("KERNEL_OK")
</pallas_src>

<mosaic_0001>
module attributes {stable_mosaic.version = 11 : i64} {
  func.func @_make_dense_kernel(%arg0: i32, %arg1: memref<1x8x456xf32, #tpu.memory_space<vmem>>, %arg2: memref<8x72xf32, #tpu.memory_space<vmem>>, %arg3: memref<8x1xf32, #tpu.memory_space<vmem>>, %arg4: memref<1x12x384xf32, #tpu.memory_space<vmem>>) attributes {dimension_semantics = [#tpu.dimension_semantics<parallel>], iteration_bounds = array<i64: 2>, scalar_prefetch = 0 : i64, scratch_operands = 0 : i64, tpu.core_type = #tpu.core_type<tc>, window_params = [{transform_indices = @transform_0, window_bounds = array<i64: 1, 8, 456>}, {pipeline_mode = #tpu.pipeline_mode<synchronous>, transform_indices = @transform_1, window_bounds = array<i64: 8, 72>}, {pipeline_mode = #tpu.pipeline_mode<synchronous>, transform_indices = @transform_2, window_bounds = array<i64: 8, 1>}, {transform_indices = @transform_3, window_bounds = array<i64: 1, 12, 384>}]} {
    %c0 = arith.constant 0 : index
    %c0_0 = arith.constant 0 : index
    %c0_1 = arith.constant 0 : index
    %0 = vector.load %arg1[%c0, %c0_0, %c0_1] : memref<1x8x456xf32, #tpu.memory_space<vmem>>, vector<1x8x384xf32>
    %1 = vector.shape_cast %0 : vector<1x8x384xf32> to vector<8x384xf32>
    %c0_2 = arith.constant 0 : index
    %c0_3 = arith.constant 0 : index
    %c1 = arith.constant 1 : index
    %2 = vector.load %arg1[%c0_2, %c0_3, %c1] : memref<1x8x456xf32, #tpu.memory_space<vmem>>, vector<1x8x384xf32>
    %3 = vector.shape_cast %2 : vector<1x8x384xf32> to vector<8x384xf32>
    %c0_4 = arith.constant 0 : index
    %c0_5 = arith.constant 0 : index
    %c2 = arith.constant 2 : index
    %4 = vector.load %arg1[%c0_4, %c0_5, %c2] : memref<1x8x456xf32, #tpu.memory_space<vmem>>, vector<1x8x384xf32>
    %5 = vector.shape_cast %4 : vector<1x8x384xf32> to vector<8x384xf32>
    %c0_6 = arith.constant 0 : index
    %c0_7 = arith.constant 0 : index
    %c24 = arith.constant 24 : index
    %6 = vector.load %arg1[%c0_6, %c0_7, %c24] : memref<1x8x456xf32, #tpu.memory_space<vmem>>, vector<1x8x384xf32>
    %7 = vector.shape_cast %6 : vector<1x8x384xf32> to vector<8x384xf32>
    %c0_8 = arith.constant 0 : index
    %c0_9 = arith.constant 0 : index
    %c25 = arith.constant 25 : index
    %8 = vector.load %arg1[%c0_8, %c0_9, %c25] : memref<1x8x456xf32, #tpu.memory_space<vmem>>, vector<1x8x384xf32>
    %9 = vector.shape_cast %8 : vector<1x8x384xf32> to vector<8x384xf32>
    %c0_10 = arith.constant 0 : index
    %c0_11 = arith.constant 0 : index
    %c26 = arith.constant 26 : index
    %10 = vector.load %arg1[%c0_10, %c0_11, %c26] : memref<1x8x456xf32, #tpu.memory_space<vmem>>, vector<1x8x384xf32>
    %11 = vector.shape_cast %10 : vector<1x8x384xf32> to vector<8x384xf32>
    %c0_12 = arith.constant 0 : index
    %c0_13 = arith.constant 0 : index
    %c48 = arith.constant 48 : index
    %12 = vector.load %arg1[%c0_12, %c0_13, %c48] : memref<1x8x456xf32, #tpu.memory_space<vmem>>, vector<1x8x384xf32>
    %13 = vector.shape_cast %12 : vector<1x8x384xf32> to vector<8x384xf32>
    %c0_14 = arith.constant 0 : index
    %c0_15 = arith.constant 0 : index
    %c49 = arith.constant 49 : index
    %14 = vector.load %arg1[%c0_14, %c0_15, %c49] : memref<1x8x456xf32, #tpu.memory_space<vmem>>, vector<1x8x384xf32>
    %15 = vector.shape_cast %14 : vector<1x8x384xf32> to vector<8x384xf32>
    %c0_16 = arith.constant 0 : index
    %c0_17 = arith.constant 0 : index
    %c50 = arith.constant 50 : index
    %16 = vector.load %arg1[%c0_16, %c0_17, %c50] : memref<1x8x456xf32, #tpu.memory_space<vmem>>, vector<1x8x384xf32>
    %17 = vector.shape_cast %16 : vector<1x8x384xf32> to vector<8x384xf32>
    %18 = tpu.concatenate %1, %3, %5, %7, %9, %11, %13, %15, %17 in 0 : vector<8x384xf32>, vector<8x384xf32>, vector<8x384xf32>, vector<8x384xf32>, vector<8x384xf32>, vector<8x384xf32>, vector<8x384xf32>, vector<8x384xf32>, vector<8x384xf32> -> vector<72x384xf32>
    %c0_18 = arith.constant 0 : index
    %c0_19 = arith.constant 0 : index
    %19 = vector.load %arg2[%c0_18, %c0_19] : memref<8x72xf32, #tpu.memory_space<vmem>>, vector<8x72xf32>
    %cst = arith.constant dense<0.000000e+00> : vector<8x384xf32>
    %20 = tpu.matmul %19, %18, %cst {dimension_numbers = #tpu.dot_dimension_numbers<[1], [0], [0], [1], [0, 0, 1, 1], [], []>} : vector<8x72xf32>, vector<72x384xf32>, vector<8x384xf32> -> vector<8x384xf32>
    %c0_20 = arith.constant 0 : index
    %c0_21 = arith.constant 0 : index
    %21 = vector.load %arg3[%c0_20, %c0_21] : memref<8x1xf32, #tpu.memory_space<vmem>>, vector<8x1xf32>
    %22 = vector.broadcast %21 : vector<8x1xf32> to vector<8x384xf32>
    %23 = arith.addf %20, %22 : vector<8x384xf32>
    %cst_22 = arith.constant 0.000000e+00 : f32
    %24 = vector.broadcast %cst_22 : f32 to vector<8x384xf32>
    %25 = arith.maximumf %23, %24 : vector<8x384xf32>
    %c0_23 = arith.constant 0 : index
    %c0_24 = arith.constant 0 : index
    %c25_25 = arith.constant 25 : index
    %26 = vector.load %arg1[%c0_23, %c0_24, %c25_25] : memref<1x8x456xf32, #tpu.memory_space<vmem>>, vector<1x4x384xf32>
    %27 = vector.shape_cast %26 : vector<1x4x384xf32> to vector<4x384xf32>
    %c0_26 = arith.constant 0 : index
    %c0_27 = arith.constant 0 : index
    %c0_28 = arith.constant 0 : index
    %28 = vector.load %arg4[%c0_26, %c0_27, %c0_28] : memref<1x12x384xf32, #tpu.memory_space<vmem>>, vector<1x4x384xf32>
    %29 = vector.shape_cast %28 : vector<1x4x384xf32> to vector<4x384xf32>
    %30 = vector.shape_cast %27 : vector<4x384xf32> to vector<1x4x384xf32>
    tpu.vector_store %arg4[%c0_26, %c0_27, %c0_28], %30 {strides = array<i32>} : memref<1x12x384xf32, #tpu.memory_space<vmem>>, vector<1x4x384xf32>,
    %c0_29 = arith.constant 0 : index
    %c4 = arith.constant 4 : index
    %c0_30 = arith.constant 0 : index
    %31 = vector.load %arg4[%c0_29, %c4, %c0_30] : memref<1x12x384xf32, #tpu.memory_space<vmem>>, vector<1x8x384xf32>
    %32 = vector.shape_cast %31 : vector<1x8x384xf32> to vector<8x384xf32>
    %33 = vector.shape_cast %25 : vector<8x384xf32> to vector<1x8x384xf32>
    tpu.vector_store %arg4[%c0_29, %c4, %c0_30], %33 {strides = array<i32>} : memref<1x12x384xf32, #tpu.memory_space<vmem>>, vector<1x8x384xf32>,
    return
  }
  func.func @transform_0(%arg0: i32) -> (i32, i32, i32) {
    %c0_i32 = arith.constant 0 : i32
    %c0_i32_0 = arith.constant 0 : i32
    %c0_i32_1 = arith.constant 0 : i32
    return %arg0, %c0_i32, %c0_i32_0 : i32, i32, i32
  }
  func.func @transform_1(%arg0: i32) -> (i32, i32) {
    %c0_i32 = arith.constant 0 : i32
    %c0_i32_0 = arith.constant 0 : i32
    %c0_i32_1 = arith.constant 0 : i32
    return %c0_i32, %c0_i32_0 : i32, i32
  }
  func.func @transform_2(%arg0: i32) -> (i32, i32) {
    %c0_i32 = arith.constant 0 : i32
    %c0_i32_0 = arith.constant 0 : i32
    %c0_i32_1 = arith.constant 0 : i32
    return %c0_i32, %c0_i32_0 : i32, i32
  }
  func.func @transform_3(%arg0: i32) -> (i32, i32, i32) {
    %c0_i32 = arith.constant 0 : i32
    %c0_i32_0 = arith.constant 0 : i32
    %c0_i32_1 = arith.constant 0 : i32
    return %arg0, %c0_i32, %c0_i32_0 : i32, i32, i32
  }
}

</mosaic_0001>

<llo_original>
// kernel: tpu_custom_call.1
$region0: #{tpu_custom_call.1}
  #allocation0 [shape = 'u32[]', space=smem, size = 0x4, offset = 0x4, fixed_abs, tag = 'smem constant byte address 0x4 - core index']
  #allocation1 [shape = 'u32[144,128]{1,0:T(1,128)}', space=vmem, size = 0x12000, scoped, tag = 'internal scratch']
  %s0 = inlined_call_operand.hbm [shape: f32[2,8,456], index: 0, kind: input, shape index: {}]
  %s1 = inlined_call_operand.vmem [shape: f32[8,72], index: 1, kind: input, shape index: {}]
  %s2 = inlined_call_operand.vmem [shape: f32[8,1], index: 2, kind: input, shape index: {}]
  %s3 = inlined_call_operand.vmem [shape: f32[2,12,384], index: 3, kind: output, shape index: {}]
  %s4 = sld [smem:[#allocation0]]
  $region49: #{tpu_custom_call.1} parent=0
    _
  %s6 = ssub.s32 1, %s4
  %s7 = scalar_select 0, %s6, %s4
  $region1: #{tpu_custom_call.1} parent=0
    #allocation2 [shape = 'u8[32768]{0}', space=vmem, size = 0x8000, scoped, tag = 'input window, operand 0']
    #allocation3 [shape = 's32[2]{0}', space=sflag, size = 0x8, scoped, tag = 'scoped memory for tpu_custom_call.1']
    %8 = vsyncpa [#allocation3], 0
    %s9 = scalar_lea.sflag [#allocation3], 1
    %10 = vsyncpa %s9, 0
    loop: start=0, step=1, limit=4
    $region2: #{tpu_custom_call.1} parent=1 // loop_pre_header
      _
    $region3: #{tpu_custom_call.1} parent=1 // loop_header
      %s12 = sphi 0, %s16
      %p13 = scmp.ge.s32.totalorder %s12, 4
      %s22 = sphi 0, %s24
      %s25 = sphi 0, %s22
      %s26 = sphi 0, %s25
      %s42 = sphi 0, %s26
      %s46 = sphi 0, %s46
      %s48 = sphi 0, %s46
      %s49 = sphi 0, %s48
      %s63 = sphi 0, %s49
      %s67 = sphi 0, %s67
      %s69 = sphi 0, %s67
      %s70 = sphi 0, %s69
      %s84 = sphi 0, %s70
      %s90 = sphi 0, %s92
      %s93 = sphi 0, %s90
      %s94 = sphi 0, %s93
      %s110 = sphi 0, %s94
    $region4: #{tpu_custom_call.1} parent=1 // loop_header_branch
      %15 = sbr.rel (%p13) target = $region8
    $region5: #{tpu_custom_call.1} parent=1 // loop_body
      %s17 = ssub.s32 %s12, 1
      %s18 = ssub.s32 %s12, 2
      %s19 = sadd.s32 %s12, 1
      %s20 = ssub.s32 %s12, %s19
      %p21 = scmp.eq.s32.totalorder %s20, 0
      %s23 = sadd.s32 %s22, 1
      %s24 = scalar_select %p21, %s22, %s23
      %p27 = pneg %p21
      %p28 = scmp.eq.s32.totalorder %s12, 1
      %p29 = por %p27, %p28
      %p30 = scmp.ne.s32.totalorder %s22, %s25
      %p31 = scmp.eq.s32.totalorder %s12, 0
      %p32 = por %p30, %p31
      %p33 = scmp.ne.s32.totalorder %s22, %s25
      %p34 = scmp.eq.s32.totalorder %s17, 1
      %p35 = por %p33, %p34
      %p36 = scmp.ne.s32.totalorder %s25, %s26
      %p37 = scmp.eq.s32.totalorder %s17, 0
      %p38 = por %p36, %p37
      %p39 = scmp.ne.s32.totalorder %s25, %s26
      %p40 = scmp.eq.s32.totalorder %s18, 1
      %p41 = por %p39, %p40
      %p43 = scmp.ne.s32.totalorder %s26, %s42
      %p44 = scmp.eq.s32.totalorder %s18, 0
      %p45 = por %p43, %p44
      %s47 = sadd.s32 %s46, 1
      %p50 = scmp.eq.s32.totalorder %s12, 1
      %p51 = scmp.ne.s32.totalorder %s46, %s48
      %p52 = scmp.eq.s32.totalorder %s12, 0
      %p53 = por %p51, %p52
      %p54 = scmp.ne.s32.totalorder %s46, %s48
      %p55 = scmp.eq.s32.totalorder %s17, 1
      %p56 = por %p54, %p55
      %p57 = scmp.ne.s32.totalorder %s48, %s49
      %p58 = scmp.eq.s32.totalorder %s17, 0
      %p59 = por %p57, %p58
      %p60 = scmp.ne.s32.totalorder %s48, %s49
      %p61 = scmp.eq.s32.totalorder %s18, 1
      %p62 = por %p60, %p61
      %p64 = scmp.ne.s32.totalorder %s49, %s63
      %p65 = scmp.eq.s32.totalorder %s18, 0
      %p66 = por %p64, %p65
      %s68 = sadd.s32 %s67, 1
      %p71 = scmp.eq.s32.totalorder %s12, 1
      %p72 = scmp.ne.s32.totalorder %s67, %s69
      %p73 = scmp.eq.s32.totalorder %s12, 0
      %p74 = por %p72, %p73
      %p75 = scmp.ne.s32.totalorder %s67, %s69
      %p76 = scmp.eq.s32.totalorder %s17, 1
      %p77 = por %p75, %p76
      %p78 = scmp.ne.s32.totalorder %s69, %s70
      %p79 = scmp.eq.s32.totalorder %s17, 0
      %p80 = por %p78, %p79
      %p81 = scmp.ne.s32.totalorder %s69, %s70
      %p82 = scmp.eq.s32.totalorder %s18, 1
      %p83 = por %p81, %p82
      %p85 = scmp.ne.s32.totalorder %s70, %s84
      %p86 = scmp.eq.s32.totalorder %s18, 0
      %p87 = por %p85, %p86
      %s88 = ssub.s32 %s12, %s19
      %p89 = scmp.eq.s32.totalorder %s88, 0
      %s91 = sadd.s32 %s90, 1
      %s92 = scalar_select %p89, %s90, %s91
      %p95 = pneg %p89
      %p96 = scmp.eq.s32.totalorder %s12, 1
      %p97 = por %p95, %p96
      %p98 = scmp.ne.s32.totalorder %s90, %s93
      %p99 = scmp.eq.s32.totalorder %s12, 0
      %p100 = por %p98, %p99
      %p101 = scmp.ne.s32.totalorder %s90, %s93
      %p102 = scmp.eq.s32.totalorder %s17, 1
      %p103 = por %p101, %p102
      %p104 = scmp.ne.s32.totalorder %s93, %s94
      %p105 = scmp.eq.s32.totalorder %s17, 0
      %p106 = por %p104, %p105
      %p107 = scmp.ne.s32.totalorder %s93, %s94
      %p108 = scmp.eq.s32.totalorder %s18, 1
      %p109 = por %p107, %p108
      %p111 = scmp.ne.s32.totalorder %s94, %s110
      %p112 = scmp.eq.s32.totalorder %s18, 0
      %p113 = por %p111, %p112
      %p114 = scmp.le.s32.totalorder 1, %s12
      %p115 = scmp.lt.s32.totalorder %s12, 3
      %p116 = pnand %p114, %p115
      %p117 = pneg %p116
      // Predicated region
      $region9: #{tpu_custom_call.1} parent=5 // pred_check
        _
      $region10: #{tpu_custom_call.1} parent=5 // pred_check_branch
        %119 = sbr.rel (%p116) target = $region12
      $region11: #{tpu_custom_call.1} parent=5 // pred_region
        %s120 = ssub.s32 %s12, 1
        // Predicated region
        $region13: #{tpu_custom_call.1} parent=11 // pred_check
          %p121 = pneg %p59
        $region14: #{tpu_custom_call.1} parent=11 // pred_check_branch
          %123 = sbr.rel (%p121) target = $region16
        $region15: #{tpu_custom_call.1} parent=11 // pred_region
          _
        $region16: #{tpu_custom_call.1} parent=11 // pred_fallthru
          _
        // Predicated region
        $region17: #{tpu_custom_call.1} parent=11 // pred_check
          %p124 = pneg %p80
        $region18: #{tpu_custom_call.1} parent=11 // pred_check_branch
          %126 = sbr.rel (%p124) target = $region20
        $region19: #{tpu_custom_call.1} parent=11 // pred_region
          _
        $region20: #{tpu_custom_call.1} parent=11 // pred_fallthru
          _
      $region12: #{tpu_custom_call.1} parent=5 // pred_fallthru
        _
      %p127 = scmp.lt.s32.totalorder %s12, 2
      // Predicated region
      $region21: #{tpu_custom_call.1} parent=5 // pred_check
        %p128 = pneg %p127
      $region22: #{tpu_custom_call.1} parent=5 // pred_check_branch
        %130 = sbr.rel (%p128) target = $region24
      $region23: #{tpu_custom_call.1} parent=5 // pred_region
        // Predicated region
        $region25: #{tpu_custom_call.1} parent=23 // pred_check
          %p131 = pneg %p32
        $region26: #{tpu_custom_call.1} parent=23 // pred_check_branch
          %133 = sbr.rel (%p131) target = $region28
        $region27: #{tpu_custom_call.1} parent=23 // pred_region
          %s134 = sand.u32 %s22, 1
          %s135 = scalar_lea.sflag [#allocation3], %s134
          %s136 = sand.u32 %s22, 1
          %s137 = smul.addr %s136, 32
          %s138 = scalar_lea.vmem [#allocation2], %s137
          %s140 = ssub.s32 512, 512
          %141 = vsyncadd %s135, %s140
          %s142 = smul.addr %s12, 4
          %s143 = smul.addr %s142, 128
          %s144 = scalar_lea.hbm %s0, %s143
          %s146 = sshll.u32 %s138, 4
          %s147 = int_to_ptr.vmem [resolvable:$true] %s146
          %149 = dma.hbm_to_vmem [thread:$0]  %s144, 512, %s147, %s135
        $region28: #{tpu_custom_call.1} parent=23 // pred_fallthru
          _
      $region24: #{tpu_custom_call.1} parent=5 // pred_fallthru
        _
      %p150 = scmp.le.s32.totalorder 1, %s12
      %p151 = scmp.lt.s32.totalorder %s12, 3
      %p152 = pnand %p150, %p151
      %p153 = pneg %p152
      // Predicated region
      $region29: #{tpu_custom_call.1} parent=5 // pred_check
        _
      $region30: #{tpu_custom_call.1} parent=5 // pred_check_branch
        %155 = sbr.rel (%p152) target = $region32
      $region31: #{tpu_custom_call.1} parent=5 // pred_region
        %s156 = ssub.s32 %s12, 1
        %s157 = sand.u32 %s25, 1
        %s158 = scalar_lea.sflag [#allocation3], %s157
        %s159 = sand.u32 %s25, 1
        %s160 = smul.addr %s159, 32
        %s161 = scalar_lea.vmem [#allocation2], %s160
        // Predicated region
        $region33: #{tpu_custom_call.1} parent=31 // pred_check
          %p162 = pneg %p38
        $region34: #{tpu_custom_call.1} parent=31 // pred_check_branch
          %164 = sbr.rel (%p162) target = $region36
        $region35: #{tpu_custom_call.1} parent=31 // pred_region
          %165 = dma.done %s158, 512
        $region36: #{tpu_custom_call.1} parent=31 // pred_fallthru
          _
        %s166 = sand.u32 %s25, 1
        %s167 = scalar_lea.sflag [#allocation3], %s166
        %s168 = sand.u32 %s25, 1
        %s169 = smul.addr %s168, 32
        %s170 = scalar_lea.vmem [#allocation2], %s169
        %p171 = pneg %p38
        %p172 = pneg %p35
        %p173 = pneg %p59
        %p174 = pneg %p56
        %p175 = pneg %p80
        %p176 = pneg %p77
        %p177 = pneg %p106
        %p178 = pneg %p103
        %p179 = scmp.lt.s32.totalorder %s17, 1
        %s180 = scalar_select %p179, %s17, 1
        %s181 = smul.addr %s180, 6
        %s182 = smul.addr %s181, 8
        %s183 = scalar_lea.vmem %s3, %s182
        %p184 = scmp.lt.s32.totalorder %s17, 1
        %s185 = scalar_select %p184, %s17, 1
        %s186 = smul.addr %s185, 6
        %s187 = smul.addr %s186, 8
        %s188 = scalar_lea.vmem %s3, %s187
        %v189 = vld [vmem:[%s161] sm:$0xff]
        %v190 = vld [vmem:[%s161 + $0x8] sm:$0xff]
        %v191 = vld [vmem:[%s161 + $0x10] sm:$0xff]
        %v192 = vld [vmem:[%s161 + $0x18] sm:$0xff]
        %197 = vrot.lane.b32.xlu0 %v189, 127
        %v198 = vpop.permute.xlu0 %197
        %199 = vrot.lane.b32.xlu0 %v190, 127
        %v200 = vpop.permute.xlu0 %199
        %201 = vrot.lane.b32.xlu0 %v191, 127
        %v202 = vpop.permute.xlu0 %201
        %203 = vrot.lane.b32.xlu0 %v192, 127
        %v204 = vpop.permute.xlu0 %203
        %vm205 = vcmask 1039360
        %v206 = vsel %vm205, %v198, %v200
        %v207 = vsel %vm205, %v200, %v202
        %v208 = vsel %vm205, %v202, %v204
        %212 = vrot.lane.b32.xlu0 %v189, 126
        %v213 = vpop.permute.xlu0 %212
        %214 = vrot.lane.b32.xlu0 %v190, 126
        %v215 = vpop.permute.xlu0 %214
        %216 = vrot.lane.b32.xlu0 %v191, 126
        %v217 = vpop.permute.xlu0 %216
        %218 = vrot.lane.b32.xlu0 %v192, 126
        %v219 = vpop.permute.xlu0 %218
        %vm220 = vcmask 1031168
        %v221 = vsel %vm220, %v213, %v215
        %v222 = vsel %vm220, %v215, %v217
        %v223 = vsel %vm220, %v217, %v219
        %227 = vrot.lane.b32.xlu0 %v189, 104
        %v228 = vpop.permute.xlu0 %227
        %229 = vrot.lane.b32.xlu0 %v190, 104
        %v230 = vpop.permute.xlu0 %229
        %231 = vrot.lane.b32.xlu0 %v191, 104
        %v232 = vpop.permute.xlu0 %231
        %233 = vrot.lane.b32.xlu0 %v192, 104
        %v234 = vpop.permute.xlu0 %233
        %vm235 = vcmask 850944
        %v236 = vsel %vm235, %v228, %v230
        %v237 = vsel %vm235, %v230, %v232
        %v238 = vsel %vm235, %v232, %v234
        %242 = vrot.lane.b32.xlu0 %v189, 103
        %v243 = vpop.permute.xlu0 %242
        %244 = vrot.lane.b32.xlu0 %v190, 103
        %v245 = vpop.permute.xlu0 %244
        %246 = vrot.lane.b32.xlu0 %v191, 103
        %v247 = vpop.permute.xlu0 %246
        %248 = vrot.lane.b32.xlu0 %v192, 103
        %v249 = vpop.permute.xlu0 %248
        %vm250 = vcmask 842752
        %v251 = vsel %vm250, %v243, %v245
        %v252 = vsel %vm250, %v245, %v247
        %v253 = vsel %vm250, %v247, %v249
        %257 = vrot.lane.b32.xlu0 %v189, 102
        %v258 = vpop.permute.xlu0 %257
        %259 = vrot.lane.b32.xlu0 %v190, 102
        %v260 = vpop.permute.xlu0 %259
        %261 = vrot.lane.b32.xlu0 %v191, 102
        %v262 = vpop.permute.xlu0 %261
        %263 = vrot.lane.b32.xlu0 %v192, 102
        %v264 = vpop.permute.xlu0 %263
        %vm265 = vcmask 834560
        %v266 = vsel %vm265, %v258, %v260
        %v267 = vsel %vm265, %v260, %v262
        %v268 = vsel %vm265, %v262, %v264
        %272 = vrot.lane.b32.xlu0 %v189, 80
        %v273 = vpop.permute.xlu0 %272
        %274 = vrot.lane.b32.xlu0 %v190, 80
        %v275 = vpop.permute.xlu0 %274
        %276 = vrot.lane.b32.xlu0 %v191, 80
        %v277 = vpop.permute.xlu0 %276
        %278 = vrot.lane.b32.xlu0 %v192, 80
        %v279 = vpop.permute.xlu0 %278
        %vm280 = vcmask 654336
        %v281 = vsel %vm280, %v273, %v275
        %v282 = vsel %vm280, %v275, %v277
        %v283 = vsel %vm280, %v277, %v279
        %287 = vrot.lane.b32.xlu0 %v189, 79
        %v288 = vpop.permute.xlu0 %287
        %289 = vrot.lane.b32.xlu0 %v190, 79
        %v290 = vpop.permute.xlu0 %289
        %291 = vrot.lane.b32.xlu0 %v191, 79
        %v292 = vpop.permute.xlu0 %291
        %293 = vrot.lane.b32.xlu0 %v192, 79
        %v294 = vpop.permute.xlu0 %293
        %vm295 = vcmask 646144
        %v296 = vsel %vm295, %v288, %v290
        %v297 = vsel %vm295, %v290, %v292
        %v298 = vsel %vm295, %v292, %v294
        %302 = vrot.lane.b32.xlu0 %v189, 78
        %v303 = vpop.permute.xlu0 %302
        %304 = vrot.lane.b32.xlu0 %v190, 78
        %v305 = vpop.permute.xlu0 %304
        %306 = vrot.lane.b32.xlu0 %v191, 78
        %v307 = vpop.permute.xlu0 %306
        %308 = vrot.lane.b32.xlu0 %v192, 78
        %v309 = vpop.permute.xlu0 %308
        %vm310 = vcmask 637952
        %v311 = vsel %vm310, %v303, %v305
        %v312 = vsel %vm310, %v305, %v307
        %v313 = vsel %vm310, %v307, %v309
        %v317 = vld [vmem:[%s1] sm:$0xff]
        %v318 = vld [vmem:[%s2] sm:$0xff]
        %320 = vset.pattern.permute.xlu0 0
        %321 = vperm.xlu0 %320, %v318
        %v322 = vpop.permute.xlu0 %321
        %vm324 = vcmask 588800
        %v326 = vsel %vm324, %v317, 0
        %328 = vmatprep.subr.mxu0 0.0
        %329 = vmatpush1.msra.mxu0 0.0
        %330 = vmatprep.subr.mxu0 0.0
        %331 = vmatpush1.msra.mxu0 0.0
        %332 = vmatprep.subr.mxu0 0.0
        %333 = vmatpush1.msra.mxu0 0.0
        %334 = vmatprep.subr.mxu0 0.0
        %335 = vmatpush1.msra.mxu0 0.0
        %336 = vmatprep.subr.mxu0 0.0
        %337 = vmatpush1.msra.mxu0 0.0
        %338 = vmatprep.subr.mxu0 0.0
        %339 = vmatpush1.msra.mxu0 0.0
        %340 = vmatprep.subr.mxu0 0.0
        %341 = vmatpush1.msra.mxu0 0.0
        %342 = vmatprep.subr.mxu0 %v312
        %343 = vmatpush1.msra.mxu0 %v311
        %344 = vmatprep.subr.mxu0 %v297
        %345 = vmatpush1.msra.mxu0 %v296
        %346 = vmatprep.subr.mxu0 %v282
        %347 = vmatpush1.msra.mxu0 %v281
        %348 = vmatprep.subr.mxu0 %v267
        %349 = vmatpush1.msra.mxu0 %v266
        %350 = vmatprep.subr.mxu0 %v252
        %351 = vmatpush1.msra.mxu0 %v251
        %352 = vmatprep.subr.mxu0 %v237
        %353 = vmatpush1.msra.mxu0 %v236
        %354 = vmatprep.subr.mxu0 %v222
        %355 = vmatpush1.msra.mxu0 %v221
        %356 = vmatprep.subr.mxu0 %v207
        %357 = vmatpush1.msra.mxu0 %v206
        %358 = vmatprep.subr.mxu0 %v190
        %359 = vmatpush1.msra.mxu0 %v189
        %360 = vmatprep.subr.mxu0 0.0
        %361 = vmatpush2.msra.mxu0 0.0
        %362 = vmatprep.subr.mxu0 0.0
        %363 = vmatpush2.msra.mxu0 0.0
        %364 = vmatprep.subr.mxu0 0.0
        %365 = vmatpush2.msra.mxu0 0.0
        %366 = vmatprep.subr.mxu0 0.0
        %367 = vmatpush2.msra.mxu0 0.0
        %368 = vmatprep.subr.mxu0 0.0
        %369 = vmatpush2.msra.mxu0 0.0
        %370 = vmatprep.subr.mxu0 0.0
        %371 = vmatpush2.msra.mxu0 0.0
        %372 = vmatprep.subr.mxu0 0.0
        %373 = vmatpush2.msra.mxu0 0.0
        %374 = vmatprep.subr.mxu0 0.0
        %375 = vmatpush2.msra.mxu0 0.0
        %376 = vmatprep.subr.mxu0 0.0
        %377 = vmatpush2.msra.mxu0 0.0
        %378 = vmatprep.subr.mxu0 0.0
        %379 = vmatpush2.msra.mxu0 0.0
        %380 = vmatprep.subr.mxu0 0.0
        %381 = vmatpush2.msra.mxu0 0.0
        %382 = vmatprep.subr.mxu0 0.0
        %383 = vmatpush2.msra.mxu0 0.0
        %384 = vmatprep.subr.mxu0 0.0
        %385 = vmatpush2.msra.mxu0 0.0
        %386 = vmatprep.subr.mxu0 0.0
        %387 = vmatpush2.msra.mxu0 0.0
        %388 = vmatprep.subr.mxu0 0.0
        %389 = vmatpush2.msra.mxu0 0.0
        %390 = vmatprep.subr.mxu0 0.0
        %391 = vmatpush2.msra.mxu0 0.0
        %392 = vmatprep.mubr.f32.mxu0 0.0
        %393 = vmatmul.mubr.f32.gmra.mxu0 %v326
        %v394 = vpop.f32.mrf.mxu0
        %v395 = vadd.f32 %v322, %v394
        %v396 = vpop.f32.mrf.mxu0
        %v397 = vadd.f32 %v322, %v396
        %398 = vdwg.mxu0
        %399 = vmatprep.subr.mxu0 0.0
        %400 = vmatpush1.msra.mxu0 0.0
        %401 = vmatprep.subr.mxu0 0.0
        %402 = vmatpush1.msra.mxu0 0.0
        %403 = vmatprep.subr.mxu0 0.0
        %404 = vmatpush1.msra.mxu0 0.0
        %405 = vmatprep.subr.mxu0 0.0
        %406 = vmatpush1.msra.mxu0 0.0
        %407 = vmatprep.subr.mxu0 0.0
        %408 = vmatpush1.msra.mxu0 0.0
        %409 = vmatprep.subr.mxu0 0.0
        %410 = vmatpush1.msra.mxu0 0.0
        %411 = vmatprep.subr.mxu0 0.0
        %412 = vmatpush1.msra.mxu0 0.0
        %413 = vmatprep.subr.mxu0 0.0
        %414 = vmatpush1.msra.mxu0 %v313
        %415 = vmatprep.subr.mxu0 0.0
        %416 = vmatpush1.msra.mxu0 %v298
        %417 = vmatprep.subr.mxu0 0.0
        %418 = vmatpush1.msra.mxu0 %v283
        %419 = vmatprep.subr.mxu0 0.0
        %420 = vmatpush1.msra.mxu0 %v268
        %421 = vmatprep.subr.mxu0 0.0
        %422 = vmatpush1.msra.mxu0 %v253
        %423 = vmatprep.subr.mxu0 0.0
        %424 = vmatpush1.msra.mxu0 %v238
        %425 = vmatprep.subr.mxu0 0.0
        %426 = vmatpush1.msra.mxu0 %v223
        %427 = vmatprep.subr.mxu0 0.0
        %428 = vmatpush1.msra.mxu0 %v208
        %429 = vmatprep.subr.mxu0 0.0
        %430 = vmatpush1.msra.mxu0 %v191
        %431 = vmatprep.subr.mxu0 0.0
        %432 = vmatpush2.msra.mxu0 0.0
        %433 = vmatprep.subr.mxu0 0.0
        %434 = vmatpush2.msra.mxu0 0.0
        %435 = vmatprep.subr.mxu0 0.0
        %436 = vmatpush2.msra.mxu0 0.0
        %437 = vmatprep.subr.mxu0 0.0
        %438 = vmatpush2.msra.mxu0 0.0
        %439 = vmatprep.subr.mxu0 0.0
        %440 = vmatpush2.msra.mxu0 0.0
        %441 = vmatprep.subr.mxu0 0.0
        %442 = vmatpush2.msra.mxu0 0.0
        %443 = vmatprep.subr.mxu0 0.0
        %444 = vmatpush2.msra.mxu0 0.0
        %445 = vmatprep.subr.mxu0 0.0
        %446 = vmatpush2.msra.mxu0 0.0
        %447 = vmatprep.subr.mxu0 0.0
        %448 = vmatpush2.msra.mxu0 0.0
        %449 = vmatprep.subr.mxu0 0.0
        %450 = vmatpush2.msra.mxu0 0.0
        %451 = vmatprep.subr.mxu0 0.0
        %452 = vmatpush2.msra.mxu0 0.0
        %453 = vmatprep.subr.mxu0 0.0
        %454 = vmatpush2.msra.mxu0 0.0
        %455 = vmatprep.subr.mxu0 0.0
        %456 = vmatpush2.msra.mxu0 0.0
        %457 = vmatprep.subr.mxu0 0.0
        %458 = vmatpush2.msra.mxu0 0.0
        %459 = vmatprep.subr.mxu0 0.0
        %460 = vmatpush2.msra.mxu0 0.0
        %461 = vmatprep.subr.mxu0 0.0
        %462 = vmatpush2.msra.mxu0 0.0
        %463 = vmatprep.mubr.f32.mxu0 0.0
        %464 = vmatmul.mubr.f32.gmra.mxu0 %v326
        %v465 = vpop.f32.mrf.mxu0
        %v466 = vadd.f32 %v322, %v465
        %v467 = vpop.f32.mrf.mxu0
        %468 = vdwg.mxu0
        %v469 = vmax.f32 %v395, 0.0
        %v470 = vmax.f32 %v397, 0.0
        %v471 = vmax.f32 %v466, 0.0
        %v472 = vld [vmem:[%s161] sm:$0xf]
        %v473 = vld [vmem:[%s161 + $0x8] sm:$0xf]
        %v474 = vld [vmem:[%s161 + $0x10] sm:$0xf]
        %v475 = vld [vmem:[%s161 + $0x18] sm:$0xf]
        %480 = vrot.lane.b32.xlu0 %v472, 103
        %v481 = vpop.permute.xlu0 %480
        %482 = vrot.lane.b32.xlu0 %v473, 103
        %v483 = vpop.permute.xlu0 %482
        %484 = vrot.lane.b32.xlu0 %v474, 103
        %v485 = vpop.permute.xlu0 %484
        %486 = vrot.lane.b32.xlu0 %v475, 103
        %v487 = vpop.permute.xlu0 %486
        %v488 = vsel %vm250, %v481, %v483
        %v489 = vsel %vm250, %v483, %v485
        %v490 = vsel %vm250, %v485, %v487
        %494 = vst [vmem:[%s188] sm:$0xf] %v488
        %495 = vst [vmem:[%s188 + $0x8] sm:$0xf] %v489
        %496 = vst [vmem:[%s188 + $0x10] sm:$0xf] %v490
        %v500 = vrot.slane %v469, 4
        %v501 = vrot.slane %v470, 4
        %v502 = vrot.slane %v471, 4
        %506 = vst [vmem:[%s188] sm:$0xf0] %v500
        %507 = vst [vmem:[%s188 + $0x8] sm:$0xf0] %v501
        %508 = vst [vmem:[%s188 + $0x10] sm:$0xf0] %v502
        %509 = vst [vmem:[%s188 + $0x18] sm:$0xf] %v500
        %510 = vst [vmem:[%s188 + $0x20] sm:$0xf] %v501
        %511 = vst [vmem:[%s188 + $0x28] sm:$0xf] %v502
        %p512 = scmp.lt.s32.totalorder %s17, 1
        %s513 = scalar_select %p512, %s17, 1
        %s514 = smul.addr %s513, 6
        %s515 = smul.addr %s514, 8
        %s516 = scalar_lea.vmem %s3, %s515
        // Predicated region
        $region37: #{tpu_custom_call.1} parent=31 // pred_check
          %p517 = pneg %p103
        $region38: #{tpu_custom_call.1} parent=31 // pred_check_branch
          %519 = sbr.rel (%p517) target = $region40
        $region39: #{tpu_custom_call.1} parent=31 // pred_region
          _
        $region40: #{tpu_custom_call.1} parent=31 // pred_fallthru
          _
      $region32: #{tpu_custom_call.1} parent=5 // pred_fallthru
        _
      %p520 = scmp.le.s32.totalorder 2, %s12
      // Predicated region
      $region41: #{tpu_custom_call.1} parent=5 // pred_check
        %p521 = pneg %p520
      $region42: #{tpu_custom_call.1} parent=5 // pred_check_branch
        %523 = sbr.rel (%p521) target = $region44
      $region43: #{tpu_custom_call.1} parent=5 // pred_region
        %s524 = ssub.s32 %s12, 2
        // Predicated region
        $region45: #{tpu_custom_call.1} parent=43 // pred_check
          %p525 = pneg %p109
        $region46: #{tpu_custom_call.1} parent=43 // pred_check_branch
          %527 = sbr.rel (%p525) target = $region48
        $region47: #{tpu_custom_call.1} parent=43 // pred_region
          %p528 = scmp.lt.s32.totalorder %s18, 1
          %s529 = scalar_select %p528, %s18, 1
          %s530 = smul.addr %s529, 6
          %s531 = smul.addr %s530, 8
          %s532 = scalar_lea.vmem %s3, %s531
        $region48: #{tpu_custom_call.1} parent=43 // pred_fallthru
          _
      $region44: #{tpu_custom_call.1} parent=5 // pred_fallthru
        _
    $region6: #{tpu_custom_call.1} parent=1 // loop_footer
      %s16 = sadd.s32 1, %s12
    $region7: #{tpu_custom_call.1} parent=1 // loop_footer_branch
      %11 = sbr.rel target = $region3
    $region8: #{tpu_custom_call.1} parent=1 // loop_exit
      _
    %533 = vsyncpa [#allocation3], 1
    %s534 = scalar_lea.sflag [#allocation3], 1
    %535 = vsyncpa %s534, 1

</llo_original>
